<compile_context>
chip_gen: v7x
topology: tpu7x:2x2x1
jax: 0.10.0
libtpu: 0.0.40
codegen_flags: <defaults>
</compile_context>

<pallas_src>
import math

import jax
import jax.numpy as jnp
from jax import lax
from jax.experimental import pallas as pl
from jax.experimental.pallas import tpu as pltpu


def _token_conv_kernel(x_ref, w_ref, o_ref):
    """One (batch, seq-tile) block: conv1d(k=3, circular) as one im2col matmul.

    x_ref: (1, TL, 3*c_in)    im2col'd input tile (row l = [x[l-1], x[l], x[l+1]])
    w_ref: (3*c_in, d_model)  conv taps stacked along the contraction axis (resident)
    o_ref: (1, TL, d_model)
    """
    o_ref[0] = jnp.dot(
        x_ref[0], w_ref[...], preferred_element_type=jnp.float32
    ).astype(o_ref.dtype)


def _tile_bytes(tl: int, c_in: int, d_model: int, itemsize: int) -> int:
    """Exact per-step VMEM footprint for a seq tile of TL rows."""
    in_b = tl * 3 * c_in * itemsize            # im2col input tile
    out_b = tl * d_model * itemsize            # output tile
    w_b = 3 * c_in * d_model * itemsize        # resident weights
    acc_b = tl * d_model * 4                   # transient f32 matmul result
    return 2 * (in_b + out_b + w_b) + acc_b    # double-buffered I/O + scratch


def token_embedding(x: jax.Array, weight: jax.Array) -> jax.Array:
    """TokenEmbedding.forward.

    x:      (B, L, c_in)
    weight: (d_model, c_in, 3)  -- PyTorch Conv1d weight layout (O, I, K), bias=False
    returns (B, L, d_model), same dtype as x.
    """
    B, L, c_in = x.shape
    d_model, c_in_w, ksize = weight.shape
    assert c_in_w == c_in and ksize == 3

    dtype = x.dtype
    itemsize = jnp.dtype(dtype).itemsize

    # --- im2col with circular halo (wrapper-side; keeps the kernel a pure matmul). ---
    # Conv1d(k=3, circular pad=1): y[l] = W0 @ x[l-1] + W1 @ x[l] + W2 @ x[l+1] (mod L).
    # roll(x, +1)[l] = x[l-1], roll(x, -1)[l] = x[l+1].
    x_im2col = jnp.concatenate(
        [jnp.roll(x, 1, axis=1), x, jnp.roll(x, -1, axis=1)], axis=-1
    )  # (B, L, 3*c_in)

    # (d_model, c_in, 3) -> (3, c_in, d_model) -> (3*c_in, d_model): tap k occupies
    # contraction rows [k*c_in : (k+1)*c_in], matching the im2col feature order above.
    # NOTE: weights are cast to x.dtype (e.g. bf16 if x is bf16); f32 accumulation
    # keeps the deviation from PyTorch's f32 weights benign.
    w = jnp.transpose(weight, (2, 1, 0)).reshape(3 * c_in, d_model).astype(dtype)

    # --- Per-chip VMEM budget (~25% headroom). ---
    try:
        vmem_cap = pltpu.get_tpu_info().vmem_capacity_bytes
    except Exception:  # conservative fallback (v7x per-TC size)
        vmem_cap = 64 * 2**20
    budget = int(vmem_cap * 0.75)

    # --- Sequence tile: <= 1024 rows, multiple of 256 (covers f32/bf16 sublane packing
    # and feeds full MXU passes), shrunk if it would not fit the VMEM budget.  Small L
    # uses the full sequence as one tile (full-extent block is always layout-legal). ---
    if L <= 1024:
        TL = L
    else:
        TL = 1024
        while TL > 256 and _tile_bytes(TL, c_in, d_model, itemsize) > budget:
            TL //= 2

    need = _tile_bytes(TL, c_in, d_model, itemsize)
    vmem_limit_bytes = int(min(budget, max(2 * need, 32 * 2**20)))

    grid = (B, pl.cdiv(L, TL))

    out = pl.pallas_call(
        _token_conv_kernel,
        out_shape=jax.ShapeDtypeStruct((B, L, d_model), dtype),
        grid=grid,
        in_specs=[
            pl.BlockSpec((1, TL, 3 * c_in), lambda b, s: (b, s, 0)),
            pl.BlockSpec((3 * c_in, d_model), lambda b, s: (0, 0)),  # weights resident
        ],
        out_specs=pl.BlockSpec((1, TL, d_model), lambda b, s: (b, s, 0)),
        compiler_params=pltpu.CompilerParams(
            dimension_semantics=("parallel", "parallel"),
            vmem_limit_bytes=vmem_limit_bytes,
        ),
    )(x_im2col, w)
    return out


def _reference(x: jax.Array, weight: jax.Array) -> jax.Array:
    """Plain-JAX replica of the PyTorch module (for the self-test)."""
    x_perm = jnp.transpose(x, (0, 2, 1))                                 # (B, c_in, L)
    x_circ = jnp.concatenate([x_perm[:, :, -1:], x_perm, x_perm[:, :, :1]], axis=2)
    y = lax.conv_general_dilated(
        x_circ, weight, window_strides=(1,), padding="VALID",
        dimension_numbers=("NCH", "OIH", "NCH"))                          # (B, d_model, L)
    return jnp.transpose(y, (0, 2, 1))                                    # (B, L, d_model)


if __name__ == "__main__":
    key = jax.random.PRNGKey(0)
    B, L, c_in, d_model = 2, 16, 4, 128    # d_model multiple of 128 -> lane-dense store

    kx, kw = jax.random.split(key)
    x = jax.random.normal(kx, (B, L, c_in), dtype=jnp.float32)

    # Kaiming-normal (fan_in, leaky_relu) equivalent init, deterministic.
    fan_in = c_in * 3
    std = math.sqrt(2.0 / fan_in)
    weight = std * jax.random.normal(kw, (d_model, c_in, 3), dtype=jnp.float32)

    out = token_embedding(x, weight)
    out = jax.block_until_ready(out)

    ref = _reference(x, weight)

    assert out.shape == (B, L, d_model)
    assert jnp.allclose(out, ref, atol=1e-3, rtol=1e-3), "mismatch vs reference conv1d"
    print("KERNEL_OK")
</pallas_src>

<mosaic_0001>
module attributes {stable_mosaic.version = 11 : i64} {
  func.func @_token_conv_kernel(%arg0: i32, %arg1: i32, %arg2: memref<1x16x12xf32, #tpu.memory_space<vmem>>, %arg3: memref<12x128xf32, #tpu.memory_space<vmem>>, %arg4: memref<1x16x128xf32, #tpu.memory_space<vmem>>) attributes {dimension_semantics = [#tpu.dimension_semantics<parallel>, #tpu.dimension_semantics<parallel>], iteration_bounds = array<i64: 2, 1>, scalar_prefetch = 0 : i64, scratch_operands = 0 : i64, tpu.core_type = #tpu.core_type<tc>, window_params = [{transform_indices = @transform_0, window_bounds = array<i64: 1, 16, 12>}, {pipeline_mode = #tpu.pipeline_mode<synchronous>, transform_indices = @transform_1, window_bounds = array<i64: 12, 128>}, {transform_indices = @transform_2, window_bounds = array<i64: 1, 16, 128>}]} {
    %c0 = arith.constant 0 : index
    %c0_0 = arith.constant 0 : index
    %c0_1 = arith.constant 0 : index
    %0 = vector.load %arg2[%c0, %c0_0, %c0_1] : memref<1x16x12xf32, #tpu.memory_space<vmem>>, vector<1x16x12xf32>
    %1 = vector.shape_cast %0 : vector<1x16x12xf32> to vector<16x12xf32>
    %c0_2 = arith.constant 0 : index
    %c0_3 = arith.constant 0 : index
    %2 = vector.load %arg3[%c0_2, %c0_3] : memref<12x128xf32, #tpu.memory_space<vmem>>, vector<12x128xf32>
    %cst = arith.constant dense<0.000000e+00> : vector<16x128xf32>
    %3 = tpu.matmul %1, %2, %cst {dimension_numbers = #tpu.dot_dimension_numbers<[1], [0], [0], [1], [0, 0, 1, 1], [], []>} : vector<16x12xf32>, vector<12x128xf32>, vector<16x128xf32> -> vector<16x128xf32>
    %c0_4 = arith.constant 0 : index
    %c0_5 = arith.constant 0 : index
    %c0_6 = arith.constant 0 : index
    %4 = vector.load %arg4[%c0_4, %c0_5, %c0_6] : memref<1x16x128xf32, #tpu.memory_space<vmem>>, vector<1x16x128xf32>
    %5 = vector.shape_cast %4 : vector<1x16x128xf32> to vector<16x128xf32>
    %6 = vector.shape_cast %3 : vector<16x128xf32> to vector<1x16x128xf32>
    tpu.vector_store %arg4[%c0_4, %c0_5, %c0_6], %6 {strides = array<i32>} : memref<1x16x128xf32, #tpu.memory_space<vmem>>, vector<1x16x128xf32>,
    return
  }
  func.func @transform_0(%arg0: i32, %arg1: i32) -> (i32, i32, i32) {
    %c0_i32 = arith.constant 0 : i32
    %c0_i32_0 = arith.constant 0 : i32
    return %arg0, %arg1, %c0_i32 : i32, i32, i32
  }
  func.func @transform_1(%arg0: i32, %arg1: i32) -> (i32, i32) {
    %c0_i32 = arith.constant 0 : i32
    %c0_i32_0 = arith.constant 0 : i32
    %c0_i32_1 = arith.constant 0 : i32
    return %c0_i32, %c0_i32_0 : i32, i32
  }
  func.func @transform_2(%arg0: i32, %arg1: i32) -> (i32, i32, i32) {
    %c0_i32 = arith.constant 0 : i32
    %c0_i32_0 = arith.constant 0 : i32
    return %arg0, %arg1, %c0_i32 : i32, i32, i32
  }
}

</mosaic_0001>

<llo_original>
// kernel: tpu_custom_call.1
$region0: #{tpu_custom_call.1}
  #allocation0 [shape = 'u32[]', space=smem, size = 0x4, offset = 0x4, fixed_abs, tag = 'smem constant byte address 0x4 - core index']
  #allocation1 [shape = 'u32[144,128]{1,0:T(1,128)}', space=vmem, size = 0x12000, scoped, tag = 'internal scratch']
  %s0 = inlined_call_operand.vmem [shape: f32[2,16,12], index: 0, kind: input, shape index: {}]
  %s1 = inlined_call_operand.vmem [shape: f32[12,128], index: 1, kind: input, shape index: {}]
  %s2 = inlined_call_operand.hbm [shape: f32[2,16,128], index: 2, kind: output, shape index: {}]
  %s3 = sld [smem:[#allocation0]]
  $region41: #{tpu_custom_call.1} parent=0
    _
  %s5 = ssub.s32 1, %s3
  %s6 = scalar_select 0, %s5, %s3
  $region1: #{tpu_custom_call.1} parent=0
    #allocation2 [shape = 'u8[16384]{0}', space=vmem, size = 0x4000, scoped, tag = 'output window, operand 0']
    #allocation3 [shape = 's32[2]{0}', space=sflag, size = 0x8, scoped, tag = 'scoped memory for tpu_custom_call.1']
    %7 = vsyncpa [#allocation3], 0
    %s8 = scalar_lea.sflag [#allocation3], 1
    %9 = vsyncpa %s8, 0
    loop: start=0, step=1, limit=4
    $region2: #{tpu_custom_call.1} parent=1 // loop_pre_header
      _
    $region3: #{tpu_custom_call.1} parent=1 // loop_header
      %s11 = sphi 0, %s15
      %p12 = scmp.ge.s32.totalorder %s11, 4
      %s18 = sphi 0, %s30
      %s19 = sphi 0, %s26
      %s20 = sphi 0, %s18
      %s21 = sphi 0, %s19
      %s22 = sphi 0, %s20
      %s23 = sphi 0, %s21
      %s35 = sphi 0, %s37
      %s38 = sphi 0, %s35
      %s39 = sphi 0, %s38
      %s55 = sphi 0, %s39
      %s59 = sphi 0, %s59
      %s61 = sphi 0, %s59
      %s62 = sphi 0, %s61
      %s76 = sphi 0, %s62
      %s84 = sphi 0, %s86
      %s87 = sphi 0, %s84
      %s88 = sphi 0, %s87
      %s104 = sphi 0, %s88
    $region4: #{tpu_custom_call.1} parent=1 // loop_header_branch
      %14 = sbr.rel (%p12) target = $region8
    $region5: #{tpu_custom_call.1} parent=1 // loop_body
      %s16 = ssub.s32 %s11, 1
      %s17 = ssub.s32 %s11, 2
      %s24 = sadd.s32 1, %s19
      %p25 = scmp.ge.s32.totalorder %s24, 1
      %s26 = scalar_select %p25, 0, %s24
      %s27 = sadd.s32 1, %s18
      %s28 = scalar_select %p25, %s27, %s18
      %p29 = scmp.ge.s32.totalorder %s28, 2
      %s30 = scalar_select %p29, 0, %s28
      %s31 = ssub.s32 %s18, %s30
      %s32 = ssub.s32 %s19, %s26
      %s33 = sor.u32 %s31, %s32
      %p34 = scmp.eq.s32.totalorder %s33, 0
      %s36 = sadd.s32 %s35, 1
      %s37 = scalar_select %p34, %s35, %s36
      %p40 = pneg %p34
      %p41 = scmp.eq.s32.totalorder %s11, 1
      %p42 = por %p40, %p41
      %p43 = scmp.ne.s32.totalorder %s35, %s38
      %p44 = scmp.eq.s32.totalorder %s11, 0
      %p45 = por %p43, %p44
      %p46 = scmp.ne.s32.totalorder %s35, %s38
      %p47 = scmp.eq.s32.totalorder %s16, 1
      %p48 = por %p46, %p47
      %p49 = scmp.ne.s32.totalorder %s38, %s39
      %p50 = scmp.eq.s32.totalorder %s16, 0
      %p51 = por %p49, %p50
      %p52 = scmp.ne.s32.totalorder %s38, %s39
      %p53 = scmp.eq.s32.totalorder %s17, 1
      %p54 = por %p52, %p53
      %p56 = scmp.ne.s32.totalorder %s39, %s55
      %p57 = scmp.eq.s32.totalorder %s17, 0
      %p58 = por %p56, %p57
      %s60 = sadd.s32 %s59, 1
      %p63 = scmp.eq.s32.totalorder %s11, 1
      %p64 = scmp.ne.s32.totalorder %s59, %s61
      %p65 = scmp.eq.s32.totalorder %s11, 0
      %p66 = por %p64, %p65
      %p67 = scmp.ne.s32.totalorder %s59, %s61
      %p68 = scmp.eq.s32.totalorder %s16, 1
      %p69 = por %p67, %p68
      %p70 = scmp.ne.s32.totalorder %s61, %s62
      %p71 = scmp.eq.s32.totalorder %s16, 0
      %p72 = por %p70, %p71
      %p73 = scmp.ne.s32.totalorder %s61, %s62
      %p74 = scmp.eq.s32.totalorder %s17, 1
      %p75 = por %p73, %p74
      %p77 = scmp.ne.s32.totalorder %s62, %s76
      %p78 = scmp.eq.s32.totalorder %s17, 0
      %p79 = por %p77, %p78
      %s80 = ssub.s32 %s18, %s30
      %s81 = ssub.s32 %s19, %s26
      %s82 = sor.u32 %s80, %s81
      %p83 = scmp.eq.s32.totalorder %s82, 0
      %s85 = sadd.s32 %s84, 1
      %s86 = scalar_select %p83, %s84, %s85
      %p89 = pneg %p83
      %p90 = scmp.eq.s32.totalorder %s11, 1
      %p91 = por %p89, %p90
      %p92 = scmp.ne.s32.totalorder %s84, %s87
      %p93 = scmp.eq.s32.totalorder %s11, 0
      %p94 = por %p92, %p93
      %p95 = scmp.ne.s32.totalorder %s84, %s87
      %p96 = scmp.eq.s32.totalorder %s16, 1
      %p97 = por %p95, %p96
      %p98 = scmp.ne.s32.totalorder %s87, %s88
      %p99 = scmp.eq.s32.totalorder %s16, 0
      %p100 = por %p98, %p99
      %p101 = scmp.ne.s32.totalorder %s87, %s88
      %p102 = scmp.eq.s32.totalorder %s17, 1
      %p103 = por %p101, %p102
      %p105 = scmp.ne.s32.totalorder %s88, %s104
      %p106 = scmp.eq.s32.totalorder %s17, 0
      %p107 = por %p105, %p106
      %p108 = scmp.le.s32.totalorder 1, %s11
      %p109 = scmp.lt.s32.totalorder %s11, 3
      %p110 = pnand %p108, %p109
      %p111 = pneg %p110
      // Predicated region
      $region9: #{tpu_custom_call.1} parent=5 // pred_check
        _
      $region10: #{tpu_custom_call.1} parent=5 // pred_check_branch
        %113 = sbr.rel (%p110) target = $region12
      $region11: #{tpu_custom_call.1} parent=5 // pred_region
        %s114 = ssub.s32 %s11, 1
        // Predicated region
        $region13: #{tpu_custom_call.1} parent=11 // pred_check
          %p115 = pneg %p72
        $region14: #{tpu_custom_call.1} parent=11 // pred_check_branch
          %117 = sbr.rel (%p115) target = $region16
        $region15: #{tpu_custom_call.1} parent=11 // pred_region
          _
        $region16: #{tpu_custom_call.1} parent=11 // pred_fallthru
          _
      $region12: #{tpu_custom_call.1} parent=5 // pred_fallthru
        _
      %p118 = scmp.lt.s32.totalorder %s11, 2
      // Predicated region
      $region17: #{tpu_custom_call.1} parent=5 // pred_check
        %p119 = pneg %p118
      $region18: #{tpu_custom_call.1} parent=5 // pred_check_branch
        %121 = sbr.rel (%p119) target = $region20
      $region19: #{tpu_custom_call.1} parent=5 // pred_region
        // Predicated region
        $region21: #{tpu_custom_call.1} parent=19 // pred_check
          %p122 = pneg %p45
        $region22: #{tpu_custom_call.1} parent=19 // pred_check_branch
          %124 = sbr.rel (%p122) target = $region24
        $region23: #{tpu_custom_call.1} parent=19 // pred_region
          %s125 = smul.u32 2, %s19
          %p126 = scmp.lt.s32.totalorder %s18, 1
          %s127 = scalar_select %p126, %s18, 1
          %p128 = scmp.lt.s32.totalorder %s125, 1
          %s129 = scalar_select %p128, %s125, 1
          %s130 = smul.addr %s127, 2
          %s131 = sadd.s32 %s129, %s130
          %s132 = smul.addr %s131, 8
          %s133 = scalar_lea.vmem %s0, %s132
          %s134 = smul.u32 2, %s19
        $region24: #{tpu_custom_call.1} parent=19 // pred_fallthru
          _
      $region20: #{tpu_custom_call.1} parent=5 // pred_fallthru
        _
      %p135 = scmp.le.s32.totalorder 1, %s11
      %p136 = scmp.lt.s32.totalorder %s11, 3
      %p137 = pnand %p135, %p136
      %p138 = pneg %p137
      // Predicated region
      $region25: #{tpu_custom_call.1} parent=5 // pred_check
        _
      $region26: #{tpu_custom_call.1} parent=5 // pred_check_branch
        %140 = sbr.rel (%p137) target = $region28
      $region27: #{tpu_custom_call.1} parent=5 // pred_region
        %s141 = ssub.s32 %s11, 1
        %s142 = smul.u32 2, %s21
        %p143 = scmp.lt.s32.totalorder %s20, 1
        %s144 = scalar_select %p143, %s20, 1
        %p145 = scmp.lt.s32.totalorder %s142, 1
        %s146 = scalar_select %p145, %s142, 1
        %s147 = smul.addr %s144, 2
        %s148 = sadd.s32 %s146, %s147
        %s149 = smul.addr %s148, 8
        %s150 = scalar_lea.vmem %s0, %s149
        %p151 = pneg %p51
        %p152 = pneg %p48
        %p153 = pneg %p72
        %p154 = pneg %p69
        %p155 = pneg %p100
        %p156 = pneg %p97
        %s157 = sand.u32 %s87, 1
        %s158 = scalar_lea.sflag [#allocation3], %s157
        %s159 = sand.u32 %s87, 1
        %s160 = smul.addr %s159, 16
        %s161 = scalar_lea.vmem [#allocation2], %s160
        %s162 = smul.u32 2, %s21
        %p163 = scmp.lt.s32.totalorder %s20, 1
        %s164 = scalar_select %p163, %s20, 1
        %p165 = scmp.lt.s32.totalorder %s162, 1
        %s166 = scalar_select %p165, %s162, 1
        %s167 = smul.addr %s164, 2
        %s168 = sadd.s32 %s166, %s167
        %s169 = smul.addr %s168, 8
        %s170 = scalar_lea.vmem %s0, %s169
        %s171 = smul.u32 2, %s21
        %s172 = smul.u32 2, %s21
        %v173 = vld [vmem:[%s170] sm:$0xff]
        %v174 = vld [vmem:[%s170 + $0x8] sm:$0xff]
        %v175 = vld [vmem:[%s1] sm:$0xff]
        %v176 = vld [vmem:[%s1 + $0x8] sm:$0xf]
        %vm177 = vcmask 97280
        %v179 = vsel %vm177, %v173, 0
        %v182 = vsel %vm177, %v174, 0
        %vm184 = vcmask 1043456
        %v186 = vsel %vm184, %v176, 0
        %188 = vmatprep.subr.mxu0 0.0
        %189 = vmatpush1.msra.mxu0 %v175
        %190 = vmatprep.subr.mxu0 0.0
        %191 = vmatpush1.msra.mxu0 %v186
        %192 = vmatprep.subr.mxu0 0.0
        %193 = vmatpush1.msra.mxu0 0.0
        %194 = vmatprep.subr.mxu0 0.0
        %195 = vmatpush1.msra.mxu0 0.0
        %196 = vmatprep.subr.mxu0 0.0
        %197 = vmatpush1.msra.mxu0 0.0
        %198 = vmatprep.subr.mxu0 0.0
        %199 = vmatpush1.msra.mxu0 0.0
        %200 = vmatprep.subr.mxu0 0.0
        %201 = vmatpush1.msra.mxu0 0.0
        %202 = vmatprep.subr.mxu0 0.0
        %203 = vmatpush1.msra.mxu0 0.0
        %204 = vmatprep.subr.mxu0 0.0
        %205 = vmatpush1.msra.mxu0 0.0
        %206 = vmatprep.subr.mxu0 0.0
        %207 = vmatpush1.msra.mxu0 0.0
        %208 = vmatprep.subr.mxu0 0.0
        %209 = vmatpush1.msra.mxu0 0.0
        %210 = vmatprep.subr.mxu0 0.0
        %211 = vmatpush1.msra.mxu0 0.0
        %212 = vmatprep.subr.mxu0 0.0
        %213 = vmatpush1.msra.mxu0 0.0
        %214 = vmatprep.subr.mxu0 0.0
        %215 = vmatpush1.msra.mxu0 0.0
        %216 = vmatprep.subr.mxu0 0.0
        %217 = vmatpush1.msra.mxu0 0.0
        %218 = vmatprep.subr.mxu0 0.0
        %219 = vmatpush1.msra.mxu0 0.0
        %220 = vmatprep.subr.mxu0 0.0
        %221 = vmatpush1.msra.mxu0 0.0
        %222 = vmatprep.subr.mxu0 0.0
        %223 = vmatpush1.msra.mxu0 0.0
        %224 = vmatprep.subr.mxu0 0.0
        %225 = vmatpush1.msra.mxu0 0.0
        %226 = vmatprep.subr.mxu0 0.0
        %227 = vmatpush1.msra.mxu0 0.0
        %228 = vmatprep.subr.mxu0 0.0
        %229 = vmatpush1.msra.mxu0 0.0
        %230 = vmatprep.subr.mxu0 0.0
        %231 = vmatpush1.msra.mxu0 0.0
        %232 = vmatprep.subr.mxu0 0.0
        %233 = vmatpush1.msra.mxu0 0.0
        %234 = vmatprep.subr.mxu0 0.0
        %235 = vmatpush1.msra.mxu0 0.0
        %236 = vmatprep.subr.mxu0 0.0
        %237 = vmatpush1.msra.mxu0 0.0
        %238 = vmatprep.subr.mxu0 0.0
        %239 = vmatpush1.msra.mxu0 0.0
        %240 = vmatprep.subr.mxu0 0.0
        %241 = vmatpush1.msra.mxu0 0.0
        %242 = vmatprep.subr.mxu0 0.0
        %243 = vmatpush1.msra.mxu0 0.0
        %244 = vmatprep.subr.mxu0 0.0
        %245 = vmatpush1.msra.mxu0 0.0
        %246 = vmatprep.subr.mxu0 0.0
        %247 = vmatpush1.msra.mxu0 0.0
        %248 = vmatprep.subr.mxu0 0.0
        %249 = vmatpush1.msra.mxu0 0.0
        %250 = vmatprep.subr.mxu0 0.0
        %251 = vmatpush1.msra.mxu0 0.0
        %252 = vmatprep.mubr.f32.mxu0 0.0
        %253 = vmatmul.mubr.f32.gmra.mrb[0].mxu0 %v179
        %v254 = vpop.f32.mrb[0].mxu0
        %v255 = vadd.f32 0.0, %v254
        %v256 = vpop.f32.mrb[0].mxu0
        %257 = vmatprep.mubr.f32.mxu0 0.0
        %258 = vmatmul.mubr.f32.gmra.mrb[0].mxu0 %v182
        %v259 = vpop.f32.mrb[0].mxu0
        %v260 = vadd.f32 0.0, %v259
        %v261 = vpop.f32.mrb[0].mxu0
        %262 = vdwg.mxu0
        %263 = vst [vmem:[%s161] sm:$0xff] %v255
        %264 = vst [vmem:[%s161 + $0x8] sm:$0xff] %v260
        %s265 = sand.u32 %s87, 1
        %s266 = scalar_lea.sflag [#allocation3], %s265
        %s267 = sand.u32 %s87, 1
        %s268 = smul.addr %s267, 16
        %s269 = scalar_lea.vmem [#allocation2], %s268
        // Predicated region
        $region29: #{tpu_custom_call.1} parent=27 // pred_check
          %p270 = pneg %p97
        $region30: #{tpu_custom_call.1} parent=27 // pred_check_branch
          %272 = sbr.rel (%p270) target = $region32
        $region31: #{tpu_custom_call.1} parent=27 // pred_region
          %s273 = smul.u32 2, %s21
          %s275 = ssub.s32 256, 256
          %276 = vsyncadd %s266, %s275
          %s277 = smul.addr %s20, 2
          %s278 = sadd.s32 %s273, %s277
          %s279 = smul.addr %s278, 128
          %s280 = scalar_lea.hbm %s2, %s279
          %s281 = sshll.u32 %s269, 4
          %s282 = int_to_ptr.vmem [resolvable:$true] %s281
          %287 = dma.vmem_to_hbm [thread:$0]  %s282, 256, %s280, %s266, 128, 128, 8
        $region32: #{tpu_custom_call.1} parent=27 // pred_fallthru
          _
      $region28: #{tpu_custom_call.1} parent=5 // pred_fallthru
        _
      %p288 = scmp.le.s32.totalorder 2, %s11
      // Predicated region
      $region33: #{tpu_custom_call.1} parent=5 // pred_check
        %p289 = pneg %p288
      $region34: #{tpu_custom_call.1} parent=5 // pred_check_branch
        %291 = sbr.rel (%p289) target = $region36
      $region35: #{tpu_custom_call.1} parent=5 // pred_region
        %s292 = ssub.s32 %s11, 2
        // Predicated region
        $region37: #{tpu_custom_call.1} parent=35 // pred_check
          %p293 = pneg %p103
        $region38: #{tpu_custom_call.1} parent=35 // pred_check_branch
          %295 = sbr.rel (%p293) target = $region40
        $region39: #{tpu_custom_call.1} parent=35 // pred_region
          %s296 = sand.u32 %s88, 1
          %s297 = scalar_lea.sflag [#allocation3], %s296
          %s298 = sand.u32 %s88, 1
          %s299 = smul.addr %s298, 16
          %s300 = scalar_lea.vmem [#allocation2], %s299
          %301 = dma.done %s297, 256
        $region40: #{tpu_custom_call.1} parent=35 // pred_fallthru
          _
      $region36: #{tpu_custom_call.1} parent=5 // pred_fallthru
        _
    $region6: #{tpu_custom_call.1} parent=1 // loop_footer
      %s15 = sadd.s32 1, %s11
    $region7: #{tpu_custom_call.1} parent=1 // loop_footer_branch
      %10 = sbr.rel target = $region3
    $region8: #{tpu_custom_call.1} parent=1 // loop_exit
      _
    %302 = vsyncpa [#allocation3], 1
    %s303 = scalar_lea.sflag [#allocation3], 1
    %304 = vsyncpa %s303, 1

</llo_original>
